<compile_context>
chip_gen: v7x
topology: tpu7x:2x2x1
jax: 0.10.0
libtpu: 0.0.40
codegen_flags: <defaults>
</compile_context>

<pallas_src>
import jax
import jax.numpy as jnp
from jax.experimental import pallas as pl
from jax.experimental.pallas import tpu as pltpu

_LANES = 128            # TPU vreg lane width; 128 % 4 == 0 keeps coords aligned
_MAX_TILE_ROWS = 4096   # 4096 x 128 x 4 B = 2 MiB per f32 block
_MIN_PALLAS_ELEMS = 65536  # below this, the fused XLA clamp is faster


def _sublane_multiple(dtype) -> int:
    """Row-tile rounding so the minor-dim tiling stays fully packed."""
    itemsize = jnp.dtype(dtype).itemsize
    return 8 * max(1, 4 // itemsize)   # f32 -> 8, bf16 -> 16, int8/fp8 -> 32


def _make_clip_kernel(h: int, w: int):
    """Kernel closure over static image H, W (no extra input stream)."""

    def kernel(boxes_ref, out_ref):
        lanes = boxes_ref.shape[-1]
        lane = jax.lax.broadcasted_iota(jnp.int32, (1, lanes), 1)
        # lane % 4 is the box coordinate index; even -> x (max W-1), odd -> y
        # (max H-1).  Broadcasts over the row-tile in the minimum below.
        limit = jnp.where(lane % 2 == 0, w - 1, h - 1).astype(boxes_ref.dtype)
        clipped = jnp.maximum(boxes_ref[...], 0)
        out_ref[...] = jnp.minimum(clipped, limit)

    return kernel


def clip_boxes_ref(batch_imgs, batch_boxes):
    """Pure-JAX reference matching the PyTorch module."""
    h, w = batch_imgs.shape[2], batch_imgs.shape[3]
    b = jnp.maximum(batch_boxes, 0)
    max_vals = jnp.asarray([w - 1, h - 1, w - 1, h - 1], dtype=b.dtype)
    return jnp.minimum(b, max_vals)


def clip_boxes(batch_imgs, batch_boxes, *, donate_boxes: bool = False):
    """batch_imgs: (B, C, H, W) NCHW (only static H, W used);
    batch_boxes: (B, N, 4) [x1, y1, x2, y2].  Returns clipped boxes."""
    h, w = batch_imgs.shape[2], batch_imgs.shape[3]
    b, n, f = batch_boxes.shape
    assert f == 4, "boxes last dim must be 4 (x1, y1, x2, y2)"
    dtype = batch_boxes.dtype
    total = b * n * f

    # Small-input fast path: launch + pipeline prologue would dominate; let XLA
    # fuse a single tiny elementwise clamp instead.
    if total < _MIN_PALLAS_ELEMS:
        return clip_boxes_ref(batch_imgs, batch_boxes)

    sub = _sublane_multiple(dtype)
    rows = pl.cdiv(total, _LANES)

    # Lane-dense (rows, 128) view.  Zero-copy reshape when total divides 128;
    # otherwise pad at most one row's worth of elements at the tail.
    if total % _LANES == 0:
        flat2d = batch_boxes.reshape(rows, _LANES)
        padded = False
    else:
        flat = jnp.pad(batch_boxes.reshape(-1), (0, rows * _LANES - total))
        flat2d = flat.reshape(rows, _LANES)
        padded = True

    # Largest tile <= _MAX_TILE_ROWS that still leaves >= 2 grid steps, so the
    # "parallel" axis can be split across both TensorCores on v7x.
    half_rounded = -(-pl.cdiv(rows, 2) // sub) * sub
    tile_r = max(sub, min(_MAX_TILE_ROWS, half_rounded))
    grid = (pl.cdiv(rows, tile_r),)

    extra = {}
    if donate_boxes and not padded:
        # Only useful when the caller actually donates batch_boxes.
        extra["input_output_aliases"] = {0: 0}

    out = pl.pallas_call(
        _make_clip_kernel(h, w),
        out_shape=jax.ShapeDtypeStruct((rows, _LANES), dtype),
        grid_spec=pl.GridSpec(
            grid=grid,
            in_specs=[pl.BlockSpec((tile_r, _LANES), lambda i: (i, 0))],
            out_specs=pl.BlockSpec((tile_r, _LANES), lambda i: (i, 0)),
        ),
        compiler_params=pltpu.CompilerParams(
            dimension_semantics=("parallel",)
        ),
        **extra,
    )(flat2d)

    if padded:
        return out.reshape(-1)[:total].reshape(b, n, f)
    return out.reshape(b, n, f)


if __name__ == "__main__":
    key = jax.random.PRNGKey(0)
    k_img, k_small, k_big, k_odd = jax.random.split(key, 4)

    B, C, H, W = 2, 4, 16, 16
    batch_imgs = jax.random.normal(k_img, (B, C, H, W), dtype=jnp.float32)

    # 1) Small shape consistent with the module demo -> fused jnp fast path.
    boxes_small = jax.random.uniform(
        k_small, (B, 8, 4), dtype=jnp.float32, minval=-5.0, maxval=25.0
    )
    out_small = clip_boxes(batch_imgs, boxes_small)
    jax.block_until_ready(out_small)
    ref_small = clip_boxes_ref(batch_imgs, boxes_small)
    assert out_small.shape == ref_small.shape and out_small.dtype == ref_small.dtype
    assert jnp.allclose(out_small, ref_small), "fast-path mismatch vs reference"

    # 2) Realistic anchor count -> Pallas kernel, zero-copy reshape path
    #    (2 * 8192 * 4 = 65536 elements, multiple of 128).
    boxes_big = jax.random.uniform(
        k_big, (B, 8192, 4), dtype=jnp.float32, minval=-5.0, maxval=25.0
    )
    out_big = clip_boxes(batch_imgs, boxes_big)
    jax.block_until_ready(out_big)
    ref_big = clip_boxes_ref(batch_imgs, boxes_big)
    assert jnp.allclose(out_big, ref_big), "Pallas (zero-copy) mismatch vs reference"

    # 3) Non-multiple-of-128 element count -> Pallas kernel, padded fallback.
    boxes_odd = jax.random.uniform(
        k_odd, (B, 8200, 4), dtype=jnp.float32, minval=-5.0, maxval=25.0
    )
    out_odd = clip_boxes(batch_imgs, boxes_odd)
    jax.block_until_ready(out_odd)
    ref_odd = clip_boxes_ref(batch_imgs, boxes_odd)
    assert jnp.allclose(out_odd, ref_odd), "Pallas (padded) mismatch vs reference"

    print("KERNEL_OK")
</pallas_src>

<mosaic_0001>
module attributes {stable_mosaic.version = 11 : i64} {
  func.func @kernel(%arg0: i32, %arg1: memref<256x128xf32, #tpu.memory_space<vmem>>, %arg2: memref<256x128xf32, #tpu.memory_space<vmem>>) attributes {dimension_semantics = [#tpu.dimension_semantics<parallel>], iteration_bounds = array<i64: 2>, scalar_prefetch = 0 : i64, scratch_operands = 0 : i64, tpu.core_type = #tpu.core_type<tc>, window_params = [{transform_indices = @transform_0, window_bounds = array<i64: 256, 128>}, {transform_indices = @transform_1, window_bounds = array<i64: 256, 128>}]} {
    %0 = tpu.iota {dimensions = array<i32: 1>} : vector<1x128xi32>
    %c2_i32 = arith.constant 2 : i32
    %c0_i32 = arith.constant 0 : i32
    %1 = arith.cmpi eq, %c2_i32, %c0_i32 : i32
    %c1_i32 = arith.constant 1 : i32
    %2 = arith.select %1, %c1_i32, %c2_i32 : i32
    %3 = vector.broadcast %2 : i32 to vector<1x128xi32>
    %4 = arith.remsi %0, %3 : vector<1x128xi32>
    %c0_i32_0 = arith.constant 0 : i32
    %5 = vector.broadcast %c0_i32_0 : i32 to vector<1x128xi32>
    %6 = arith.cmpi ne, %4, %5 : vector<1x128xi32>
    %c0_i32_1 = arith.constant 0 : i32
    %7 = vector.broadcast %c0_i32_1 : i32 to vector<1x128xi32>
    %8 = arith.cmpi slt, %4, %7 : vector<1x128xi32>
    %c0_i32_2 = arith.constant 0 : i32
    %9 = arith.cmpi slt, %2, %c0_i32_2 : i32
    %10 = vector.broadcast %9 : i1 to vector<1x128xi1>
    %11 = vector.broadcast %10 : vector<1x128xi1> to vector<1x128xi1>
    %12 = arith.xori %8, %11 : vector<1x128xi1>
    %13 = arith.andi %12, %6 : vector<1x128xi1>
    %14 = vector.broadcast %2 : i32 to vector<1x128xi32>
    %15 = arith.addi %4, %14 : vector<1x128xi32>
    %16 = arith.select %13, %15, %4 : vector<1x128xi1>, vector<1x128xi32>
    %c0_i32_3 = arith.constant 0 : i32
    %17 = vector.broadcast %c0_i32_3 : i32 to vector<1x128xi32>
    %18 = arith.cmpi eq, %16, %17 : vector<1x128xi32>
    %c15_i32 = arith.constant 15 : i32
    %c15_i32_4 = arith.constant 15 : i32
    %19 = vector.broadcast %c15_i32 : i32 to vector<1x128xi32>
    %20 = vector.broadcast %c15_i32_4 : i32 to vector<1x128xi32>
    %21 = arith.select %18, %19, %20 : vector<1x128xi1>, vector<1x128xi32>
    %22 = arith.sitofp %21 : vector<1x128xi32> to vector<1x128xf32>
    %c0 = arith.constant 0 : index
    %c0_5 = arith.constant 0 : index
    %23 = vector.load %arg1[%c0, %c0_5] : memref<256x128xf32, #tpu.memory_space<vmem>>, vector<256x128xf32>
    %cst = arith.constant 0.000000e+00 : f32
    %24 = vector.broadcast %cst : f32 to vector<256x128xf32>
    %25 = arith.maximumf %23, %24 : vector<256x128xf32>
    %26 = vector.broadcast %22 : vector<1x128xf32> to vector<256x128xf32>
    %27 = arith.minimumf %25, %26 : vector<256x128xf32>
    %c0_6 = arith.constant 0 : index
    %c0_7 = arith.constant 0 : index
    %28 = vector.load %arg2[%c0_6, %c0_7] : memref<256x128xf32, #tpu.memory_space<vmem>>, vector<256x128xf32>
    tpu.vector_store %arg2[%c0_6, %c0_7], %27 {strides = array<i32>} : memref<256x128xf32, #tpu.memory_space<vmem>>, vector<256x128xf32>,
    return
  }
  func.func @transform_0(%arg0: i32) -> (i32, i32) {
    %c0_i32 = arith.constant 0 : i32
    %c0_i32_0 = arith.constant 0 : i32
    return %arg0, %c0_i32 : i32, i32
  }
  func.func @transform_1(%arg0: i32) -> (i32, i32) {
    %c0_i32 = arith.constant 0 : i32
    %c0_i32_0 = arith.constant 0 : i32
    return %arg0, %c0_i32 : i32, i32
  }
}

</mosaic_0001>

<llo_original>
// kernel: tpu_custom_call.1
$region0: #{tpu_custom_call.1}
  #allocation0 [shape = 'u32[]', space=smem, size = 0x4, offset = 0x4, fixed_abs, tag = 'smem constant byte address 0x4 - core index']
  #allocation1 [shape = 'u32[144,128]{1,0:T(1,128)}', space=vmem, size = 0x12000, scoped, tag = 'internal scratch']
  %s0 = inlined_call_operand.hbm [shape: f32[512,128], index: 0, kind: input, shape index: {}]
  %s1 = inlined_call_operand.hbm [shape: f32[512,128], index: 1, kind: output, shape index: {}]
  %s2 = sld [smem:[#allocation0]]
  $region41: #{tpu_custom_call.1} parent=0
    _
  %s4 = ssub.s32 1, %s2
  %s5 = scalar_select 0, %s4, %s2
  $region1: #{tpu_custom_call.1} parent=0
    #allocation2 [shape = 'u8[262144]{0}', space=vmem, size = 0x40000, scoped, tag = 'input window, operand 0']
    #allocation3 [shape = 's32[2]{0}', space=sflag, size = 0x8, scoped, tag = 'scoped memory for tpu_custom_call.1']
    #allocation4 [shape = 's32[2]{0}', space=sflag, size = 0x8, scoped, tag = 'scoped memory for tpu_custom_call.1']
    #allocation5 [shape = 'u8[262144]{0}', space=vmem, size = 0x40000, scoped, tag = 'output window, operand 0']
    %6 = vsyncpa [#allocation3], 0
    %s7 = scalar_lea.sflag [#allocation3], 1
    %8 = vsyncpa %s7, 0
    %9 = vsyncpa [#allocation4], 0
    %s10 = scalar_lea.sflag [#allocation4], 1
    %11 = vsyncpa %s10, 0
    loop: start=0, step=1, limit=4
    $region2: #{tpu_custom_call.1} parent=1 // loop_pre_header
      _
    $region3: #{tpu_custom_call.1} parent=1 // loop_header
      %s13 = sphi 0, %s17
      %p14 = scmp.ge.s32.totalorder %s13, 4
      %s23 = sphi 0, %s25
      %s26 = sphi 0, %s23
      %s27 = sphi 0, %s26
      %s43 = sphi 0, %s27
      %s49 = sphi 0, %s51
      %s52 = sphi 0, %s49
      %s53 = sphi 0, %s52
      %s69 = sphi 0, %s53
    $region4: #{tpu_custom_call.1} parent=1 // loop_header_branch
      %16 = sbr.rel (%p14) target = $region8
    $region5: #{tpu_custom_call.1} parent=1 // loop_body
      %s18 = ssub.s32 %s13, 1
      %s19 = ssub.s32 %s13, 2
      %s20 = sadd.s32 %s13, 1
      %s21 = ssub.s32 %s13, %s20
      %p22 = scmp.eq.s32.totalorder %s21, 0
      %s24 = sadd.s32 %s23, 1
      %s25 = scalar_select %p22, %s23, %s24
      %p28 = pneg %p22
      %p29 = scmp.eq.s32.totalorder %s13, 1
      %p30 = por %p28, %p29
      %p31 = scmp.ne.s32.totalorder %s23, %s26
      %p32 = scmp.eq.s32.totalorder %s13, 0
      %p33 = por %p31, %p32
      %p34 = scmp.ne.s32.totalorder %s23, %s26
      %p35 = scmp.eq.s32.totalorder %s18, 1
      %p36 = por %p34, %p35
      %p37 = scmp.ne.s32.totalorder %s26, %s27
      %p38 = scmp.eq.s32.totalorder %s18, 0
      %p39 = por %p37, %p38
      %p40 = scmp.ne.s32.totalorder %s26, %s27
      %p41 = scmp.eq.s32.totalorder %s19, 1
      %p42 = por %p40, %p41
      %p44 = scmp.ne.s32.totalorder %s27, %s43
      %p45 = scmp.eq.s32.totalorder %s19, 0
      %p46 = por %p44, %p45
      %s47 = ssub.s32 %s13, %s20
      %p48 = scmp.eq.s32.totalorder %s47, 0
      %s50 = sadd.s32 %s49, 1
      %s51 = scalar_select %p48, %s49, %s50
      %p54 = pneg %p48
      %p55 = scmp.eq.s32.totalorder %s13, 1
      %p56 = por %p54, %p55
      %p57 = scmp.ne.s32.totalorder %s49, %s52
      %p58 = scmp.eq.s32.totalorder %s13, 0
      %p59 = por %p57, %p58
      %p60 = scmp.ne.s32.totalorder %s49, %s52
      %p61 = scmp.eq.s32.totalorder %s18, 1
      %p62 = por %p60, %p61
      %p63 = scmp.ne.s32.totalorder %s52, %s53
      %p64 = scmp.eq.s32.totalorder %s18, 0
      %p65 = por %p63, %p64
      %p66 = scmp.ne.s32.totalorder %s52, %s53
      %p67 = scmp.eq.s32.totalorder %s19, 1
      %p68 = por %p66, %p67
      %p70 = scmp.ne.s32.totalorder %s53, %s69
      %p71 = scmp.eq.s32.totalorder %s19, 0
      %p72 = por %p70, %p71
      %p73 = scmp.le.s32.totalorder 1, %s13
      %p74 = scmp.lt.s32.totalorder %s13, 3
      %p75 = pnand %p73, %p74
      %p76 = pneg %p75
      // Predicated region
      $region9: #{tpu_custom_call.1} parent=5 // pred_check
        _
      $region10: #{tpu_custom_call.1} parent=5 // pred_check_branch
        %78 = sbr.rel (%p75) target = $region12
      $region11: #{tpu_custom_call.1} parent=5 // pred_region
        %s79 = ssub.s32 %s13, 1
      $region12: #{tpu_custom_call.1} parent=5 // pred_fallthru
        _
      %p80 = scmp.lt.s32.totalorder %s13, 2
      // Predicated region
      $region13: #{tpu_custom_call.1} parent=5 // pred_check
        %p81 = pneg %p80
      $region14: #{tpu_custom_call.1} parent=5 // pred_check_branch
        %83 = sbr.rel (%p81) target = $region16
      $region15: #{tpu_custom_call.1} parent=5 // pred_region
        // Predicated region
        $region17: #{tpu_custom_call.1} parent=15 // pred_check
          %p84 = pneg %p33
        $region18: #{tpu_custom_call.1} parent=15 // pred_check_branch
          %86 = sbr.rel (%p84) target = $region20
        $region19: #{tpu_custom_call.1} parent=15 // pred_region
          %s87 = sand.u32 %s23, 1
          %s88 = scalar_lea.sflag [#allocation3], %s87
          %s89 = sand.u32 %s23, 1
          %s90 = smul.addr %s89, 256
          %s91 = scalar_lea.vmem [#allocation2], %s90
          %s92 = smul.u32 32, %s13
          %s94 = ssub.s32 4096, 4096
          %95 = vsyncadd %s88, %s94
          %s96 = smul.addr %s92, 128
          %s97 = scalar_lea.hbm %s0, %s96
          %s98 = sshll.u32 %s91, 4
          %s99 = int_to_ptr.vmem [resolvable:$true] %s98
          %104 = dma.hbm_to_vmem [thread:$0]  %s97, 4096, %s99, %s88, 128, 128, 8
        $region20: #{tpu_custom_call.1} parent=15 // pred_fallthru
          _
      $region16: #{tpu_custom_call.1} parent=5 // pred_fallthru
        _
      %p105 = scmp.le.s32.totalorder 1, %s13
      %p106 = scmp.lt.s32.totalorder %s13, 3
      %p107 = pnand %p105, %p106
      %p108 = pneg %p107
      // Predicated region
      $region21: #{tpu_custom_call.1} parent=5 // pred_check
        _
      $region22: #{tpu_custom_call.1} parent=5 // pred_check_branch
        %110 = sbr.rel (%p107) target = $region24
      $region23: #{tpu_custom_call.1} parent=5 // pred_region
        %s111 = ssub.s32 %s13, 1
        %s112 = sand.u32 %s26, 1
        %s113 = scalar_lea.sflag [#allocation3], %s112
        %s114 = sand.u32 %s26, 1
        %s115 = smul.addr %s114, 256
        %s116 = scalar_lea.vmem [#allocation2], %s115
        // Predicated region
        $region25: #{tpu_custom_call.1} parent=23 // pred_check
          %p117 = pneg %p39
        $region26: #{tpu_custom_call.1} parent=23 // pred_check_branch
          %119 = sbr.rel (%p117) target = $region28
        $region27: #{tpu_custom_call.1} parent=23 // pred_region
          %120 = dma.done %s113, 4096
        $region28: #{tpu_custom_call.1} parent=23 // pred_fallthru
          _
        %s121 = sand.u32 %s26, 1
        %s122 = scalar_lea.sflag [#allocation3], %s121
        %s123 = sand.u32 %s26, 1
        %s124 = smul.addr %s123, 256
        %s125 = scalar_lea.vmem [#allocation2], %s124
        %p126 = pneg %p39
        %p127 = pneg %p36
        %p128 = pneg %p65
        %p129 = pneg %p62
        %s130 = sand.u32 %s52, 1
        %s131 = scalar_lea.sflag [#allocation4], %s130
        %s132 = sand.u32 %s52, 1
        %s133 = smul.addr %s132, 256
        %s134 = scalar_lea.vmem [#allocation5], %s133
        %s135 = smul.u32 32, %s18
        %s136 = smul.u32 32, %s18
        %v137 = vld [vmem:[%s116] sm:$0xff]
        %v138 = vld [vmem:[%s116 + $0x8] sm:$0xff]
        %v139 = vld [vmem:[%s116 + $0x10] sm:$0xff]
        %v140 = vld [vmem:[%s116 + $0x18] sm:$0xff]
        %v141 = vld [vmem:[%s116 + $0x20] sm:$0xff]
        %v142 = vld [vmem:[%s116 + $0x28] sm:$0xff]
        %v143 = vld [vmem:[%s116 + $0x30] sm:$0xff]
        %v144 = vld [vmem:[%s116 + $0x38] sm:$0xff]
        %v145 = vld [vmem:[%s116 + $0x40] sm:$0xff]
        %v146 = vld [vmem:[%s116 + $0x48] sm:$0xff]
        %v147 = vld [vmem:[%s116 + $0x50] sm:$0xff]
        %v148 = vld [vmem:[%s116 + $0x58] sm:$0xff]
        %v149 = vld [vmem:[%s116 + $0x60] sm:$0xff]
        %v150 = vld [vmem:[%s116 + $0x68] sm:$0xff]
        %v151 = vld [vmem:[%s116 + $0x70] sm:$0xff]
        %v152 = vld [vmem:[%s116 + $0x78] sm:$0xff]
        %v153 = vld [vmem:[%s116 + $0x80] sm:$0xff]
        %v154 = vld [vmem:[%s116 + $0x88] sm:$0xff]
        %v155 = vld [vmem:[%s116 + $0x90] sm:$0xff]
        %v156 = vld [vmem:[%s116 + $0x98] sm:$0xff]
        %v157 = vld [vmem:[%s116 + $0xa0] sm:$0xff]
        %v158 = vld [vmem:[%s116 + $0xa8] sm:$0xff]
        %v159 = vld [vmem:[%s116 + $0xb0] sm:$0xff]
        %v160 = vld [vmem:[%s116 + $0xb8] sm:$0xff]
        %v161 = vld [vmem:[%s116 + $0xc0] sm:$0xff]
        %v162 = vld [vmem:[%s116 + $0xc8] sm:$0xff]
        %v163 = vld [vmem:[%s116 + $0xd0] sm:$0xff]
        %v164 = vld [vmem:[%s116 + $0xd8] sm:$0xff]
        %v165 = vld [vmem:[%s116 + $0xe0] sm:$0xff]
        %v166 = vld [vmem:[%s116 + $0xe8] sm:$0xff]
        %v167 = vld [vmem:[%s116 + $0xf0] sm:$0xff]
        %v168 = vld [vmem:[%s116 + $0xf8] sm:$0xff]
        %v169 = vmax.f32 %v137, 0.0
        %v170 = vmax.f32 %v138, 0.0
        %v171 = vmax.f32 %v139, 0.0
        %v172 = vmax.f32 %v140, 0.0
        %v173 = vmax.f32 %v141, 0.0
        %v174 = vmax.f32 %v142, 0.0
        %v175 = vmax.f32 %v143, 0.0
        %v176 = vmax.f32 %v144, 0.0
        %v177 = vmax.f32 %v145, 0.0
        %v178 = vmax.f32 %v146, 0.0
        %v179 = vmax.f32 %v147, 0.0
        %v180 = vmax.f32 %v148, 0.0
        %v181 = vmax.f32 %v149, 0.0
        %v182 = vmax.f32 %v150, 0.0
        %v183 = vmax.f32 %v151, 0.0
        %v184 = vmax.f32 %v152, 0.0
        %v185 = vmax.f32 %v153, 0.0
        %v186 = vmax.f32 %v154, 0.0
        %v187 = vmax.f32 %v155, 0.0
        %v188 = vmax.f32 %v156, 0.0
        %v189 = vmax.f32 %v157, 0.0
        %v190 = vmax.f32 %v158, 0.0
        %v191 = vmax.f32 %v159, 0.0
        %v192 = vmax.f32 %v160, 0.0
        %v193 = vmax.f32 %v161, 0.0
        %v194 = vmax.f32 %v162, 0.0
        %v195 = vmax.f32 %v163, 0.0
        %v196 = vmax.f32 %v164, 0.0
        %v197 = vmax.f32 %v165, 0.0
        %v198 = vmax.f32 %v166, 0.0
        %v199 = vmax.f32 %v167, 0.0
        %v200 = vmax.f32 %v168, 0.0
        %v201 = vmin.f32 %v169, 15.0
        %v202 = vmin.f32 %v170, 15.0
        %v203 = vmin.f32 %v171, 15.0
        %v204 = vmin.f32 %v172, 15.0
        %v205 = vmin.f32 %v173, 15.0
        %v206 = vmin.f32 %v174, 15.0
        %v207 = vmin.f32 %v175, 15.0
        %v208 = vmin.f32 %v176, 15.0
        %v209 = vmin.f32 %v177, 15.0
        %v210 = vmin.f32 %v178, 15.0
        %v211 = vmin.f32 %v179, 15.0
        %v212 = vmin.f32 %v180, 15.0
        %v213 = vmin.f32 %v181, 15.0
        %v214 = vmin.f32 %v182, 15.0
        %v215 = vmin.f32 %v183, 15.0
        %v216 = vmin.f32 %v184, 15.0
        %v217 = vmin.f32 %v185, 15.0
        %v218 = vmin.f32 %v186, 15.0
        %v219 = vmin.f32 %v187, 15.0
        %v220 = vmin.f32 %v188, 15.0
        %v221 = vmin.f32 %v189, 15.0
        %v222 = vmin.f32 %v190, 15.0
        %v223 = vmin.f32 %v191, 15.0
        %v224 = vmin.f32 %v192, 15.0
        %v225 = vmin.f32 %v193, 15.0
        %v226 = vmin.f32 %v194, 15.0
        %v227 = vmin.f32 %v195, 15.0
        %v228 = vmin.f32 %v196, 15.0
        %v229 = vmin.f32 %v197, 15.0
        %v230 = vmin.f32 %v198, 15.0
        %v231 = vmin.f32 %v199, 15.0
        %v232 = vmin.f32 %v200, 15.0
        %233 = vst [vmem:[%s134] sm:$0xff] %v201
        %234 = vst [vmem:[%s134 + $0x8] sm:$0xff] %v202
        %235 = vst [vmem:[%s134 + $0x10] sm:$0xff] %v203
        %236 = vst [vmem:[%s134 + $0x18] sm:$0xff] %v204
        %237 = vst [vmem:[%s134 + $0x20] sm:$0xff] %v205
        %238 = vst [vmem:[%s134 + $0x28] sm:$0xff] %v206
        %239 = vst [vmem:[%s134 + $0x30] sm:$0xff] %v207
        %240 = vst [vmem:[%s134 + $0x38] sm:$0xff] %v208
        %241 = vst [vmem:[%s134 + $0x40] sm:$0xff] %v209
        %242 = vst [vmem:[%s134 + $0x48] sm:$0xff] %v210
        %243 = vst [vmem:[%s134 + $0x50] sm:$0xff] %v211
        %244 = vst [vmem:[%s134 + $0x58] sm:$0xff] %v212
        %245 = vst [vmem:[%s134 + $0x60] sm:$0xff] %v213
        %246 = vst [vmem:[%s134 + $0x68] sm:$0xff] %v214
        %247 = vst [vmem:[%s134 + $0x70] sm:$0xff] %v215
        %248 = vst [vmem:[%s134 + $0x78] sm:$0xff] %v216
        %249 = vst [vmem:[%s134 + $0x80] sm:$0xff] %v217
        %250 = vst [vmem:[%s134 + $0x88] sm:$0xff] %v218
        %251 = vst [vmem:[%s134 + $0x90] sm:$0xff] %v219
        %252 = vst [vmem:[%s134 + $0x98] sm:$0xff] %v220
        %253 = vst [vmem:[%s134 + $0xa0] sm:$0xff] %v221
        %254 = vst [vmem:[%s134 + $0xa8] sm:$0xff] %v222
        %255 = vst [vmem:[%s134 + $0xb0] sm:$0xff] %v223
        %256 = vst [vmem:[%s134 + $0xb8] sm:$0xff] %v224
        %257 = vst [vmem:[%s134 + $0xc0] sm:$0xff] %v225
        %258 = vst [vmem:[%s134 + $0xc8] sm:$0xff] %v226
        %259 = vst [vmem:[%s134 + $0xd0] sm:$0xff] %v227
        %260 = vst [vmem:[%s134 + $0xd8] sm:$0xff] %v228
        %261 = vst [vmem:[%s134 + $0xe0] sm:$0xff] %v229
        %262 = vst [vmem:[%s134 + $0xe8] sm:$0xff] %v230
        %263 = vst [vmem:[%s134 + $0xf0] sm:$0xff] %v231
        %264 = vst [vmem:[%s134 + $0xf8] sm:$0xff] %v232
        %s265 = sand.u32 %s52, 1
        %s266 = scalar_lea.sflag [#allocation4], %s265
        %s267 = sand.u32 %s52, 1
        %s268 = smul.addr %s267, 256
        %s269 = scalar_lea.vmem [#allocation5], %s268
        // Predicated region
        $region29: #{tpu_custom_call.1} parent=23 // pred_check
          %p270 = pneg %p62
        $region30: #{tpu_custom_call.1} parent=23 // pred_check_branch
          %272 = sbr.rel (%p270) target = $region32
        $region31: #{tpu_custom_call.1} parent=23 // pred_region
          %s273 = smul.u32 32, %s18
          %s275 = ssub.s32 4096, 4096
          %276 = vsyncadd %s266, %s275
          %s277 = smul.addr %s273, 128
          %s278 = scalar_lea.hbm %s1, %s277
          %s279 = sshll.u32 %s269, 4
          %s280 = int_to_ptr.vmem [resolvable:$true] %s279
          %285 = dma.vmem_to_hbm [thread:$0]  %s280, 4096, %s278, %s266, 128, 128, 8
        $region32: #{tpu_custom_call.1} parent=23 // pred_fallthru
          _
      $region24: #{tpu_custom_call.1} parent=5 // pred_fallthru
        _
      %p286 = scmp.le.s32.totalorder 2, %s13
      // Predicated region
      $region33: #{tpu_custom_call.1} parent=5 // pred_check
        %p287 = pneg %p286
      $region34: #{tpu_custom_call.1} parent=5 // pred_check_branch
        %289 = sbr.rel (%p287) target = $region36
      $region35: #{tpu_custom_call.1} parent=5 // pred_region
        %s290 = ssub.s32 %s13, 2
        // Predicated region
        $region37: #{tpu_custom_call.1} parent=35 // pred_check
          %p291 = pneg %p68
        $region38: #{tpu_custom_call.1} parent=35 // pred_check_branch
          %293 = sbr.rel (%p291) target = $region40
        $region39: #{tpu_custom_call.1} parent=35 // pred_region
          %s294 = sand.u32 %s53, 1
          %s295 = scalar_lea.sflag [#allocation4], %s294
          %s296 = sand.u32 %s53, 1
          %s297 = smul.addr %s296, 256
          %s298 = scalar_lea.vmem [#allocation5], %s297
          %299 = dma.done %s295, 4096
        $region40: #{tpu_custom_call.1} parent=35 // pred_fallthru
          _
      $region36: #{tpu_custom_call.1} parent=5 // pred_fallthru
        _
    $region6: #{tpu_custom_call.1} parent=1 // loop_footer
      %s17 = sadd.s32 1, %s13
    $region7: #{tpu_custom_call.1} parent=1 // loop_footer_branch
      %12 = sbr.rel target = $region3
    $region8: #{tpu_custom_call.1} parent=1 // loop_exit
      _
    %300 = vsyncpa [#allocation3], 1
    %s301 = scalar_lea.sflag [#allocation3], 1
    %302 = vsyncpa %s301, 1
    %303 = vsyncpa [#allocation4], 1
    %s304 = scalar_lea.sflag [#allocation4], 1
    %305 = vsyncpa %s304, 1

</llo_original>
